<compile_context>
chip_gen: v6e
topology: v6e:2x2x1
jax: 0.10.0
libtpu: 0.0.40
codegen_flags: <defaults>
</compile_context>

<pallas_src>
import functools

import jax
import jax.numpy as jnp
from jax.experimental import pallas as pl
from jax.experimental.pallas import tpu as pltpu


def _round_up(x, m):
    return ((x + m - 1) // m) * m


def _vmem_limit_bytes():
    # Derive from the chip when possible (v7x: 64 MiB/TC, v5e/v6e: 128 MiB) and keep
    # ~25% headroom for compiler scratch / double buffers; fall back to 48 MiB.
    try:
        return int(pltpu.get_tpu_info().vmem_capacity_bytes * 0.75)
    except Exception:
        return 48 * 1024 * 1024


# ---------------------------------------------------------------------------
# memory_layer: processed_memory = memory @ Wmem, tiled over the batch
# ---------------------------------------------------------------------------
def memory_proj_kernel(mem_ref, w_ref, o_ref):
    o_ref[0] = jnp.dot(mem_ref[0], w_ref[...],
                       preferred_element_type=jnp.float32).astype(o_ref.dtype)


# ---------------------------------------------------------------------------
# Fused decoder step: prenet + attention LSTM + location attention + decoder LSTM
# + projection|gate.  Grid = (batch_blocks, T_out); state persists in VMEM scratch.
# ---------------------------------------------------------------------------
def decode_step_kernel(
    # static dims (bound via functools.partial)
    P, E, A, D, K, pad,
    # streamed per-step inputs -------------------------------------------------
    di_ref,                 # (1, Bb, nm)   previous mel frame (go frame at t=0)
    mp1_ref, mp2_ref,       # (1, Bb, P)    prenet dropout keep-masks (0 or 1/keep)
    matt_ref, mdec_ref,     # (1, Bb, A/D)  attention/decoder hidden dropout masks
    # resident inputs (constant index over t) ----------------------------------
    memory_ref,             # (Bb, T, E)    bf16
    pmem_ref,               # (Bb, T, AD)   bf16
    mask_ref,               # (Bb, T)       f32, 1.0 where padded
    wp1_ref, wp2_ref,       # prenet weights (bf16)
    w_att_ref, b_att_ref,   # (P+E+A, 4A) bf16, (1, 4A) f32     packed attention LSTM
    wq_ref,                 # (A, AD) bf16                       query layer
    wfold_ref,              # (2K, AD) bf16                      folded location conv*dense
    v_ref,                  # (1, AD) f32
    w_dec_ref, b_dec_ref,   # (A+E+D, 4D) bf16, (1, 4D) f32      packed decoder LSTM
    w_out_ref, b_out_ref,   # (D+E, OUTC) bf16, (1, OUTC) f32    packed projection|gate
    # outputs -------------------------------------------------------------------
    melgate_ref,            # (1, Bb, OUTC) f32
    align_ref,              # (1, Bb, T)    f32
    # persistent VMEM state -------------------------------------------------------
    c_att, c_dec,           # LSTM cell states
    cat1,                   # (Bb, P+E+A)  [prenet | ctx | h_att]  (doubles as state)
    cat2,                   # (Bb, A+E+D)  [h_att  | ctx | h_dec]
    cat3,                   # (Bb, D+E)    [h_dec  | ctx]
    pad_w, pad_wc,          # (Bb, T+2*pad) zero-padded prev / cumulative attn weights
):
    f32, bf16 = jnp.float32, jnp.bfloat16
    t = pl.program_id(1)
    Bb = c_att.shape[0]
    T = mask_ref.shape[1]
    AD = wq_ref.shape[1]

    @pl.when(t == 0)
    def _init():
        c_att[...] = jnp.zeros_like(c_att)
        c_dec[...] = jnp.zeros_like(c_dec)
        cat1[...] = jnp.zeros_like(cat1)
        cat2[...] = jnp.zeros_like(cat2)
        cat3[...] = jnp.zeros_like(cat3)
        pad_w[...] = jnp.zeros_like(pad_w)
        pad_wc[...] = jnp.zeros_like(pad_wc)

    # ---- prenet (fused): Linear(bias=False) -> ReLU -> dropout(0.5), twice ----
    x = di_ref[0]                                                   # (Bb, nm) f32
    h = jnp.maximum(jnp.dot(x.astype(bf16), wp1_ref[...],
                            preferred_element_type=f32), 0.0) * mp1_ref[0]
    dec_in = jnp.maximum(jnp.dot(h.astype(bf16), wp2_ref[...],
                                 preferred_element_type=f32), 0.0) * mp2_ref[0]
    cat1[:, 0:P] = dec_in

    # ---- attention LSTMCell: one packed MXU matmul over [prenet | ctx | h_att] ----
    g = jnp.dot(cat1[...].astype(bf16), w_att_ref[...],
                preferred_element_type=f32) + b_att_ref[...]
    i_g = jax.nn.sigmoid(g[:, 0 * A:1 * A])
    f_g = jax.nn.sigmoid(g[:, 1 * A:2 * A])
    g_g = jnp.tanh(g[:, 2 * A:3 * A])
    o_g = jax.nn.sigmoid(g[:, 3 * A:4 * A])
    c_att_new = f_g * c_att[...] + i_g * g_g
    h_att = o_g * jnp.tanh(c_att_new) * matt_ref[0]                 # p_attention_dropout
    c_att[...] = c_att_new
    cat1[:, P + E:P + E + A] = h_att
    cat2[:, 0:A] = h_att

    # ---- location-sensitive attention ----
    # Build the (Bb, T, 2K) shifted prev/cumulative weight matrix from static slices
    # of the zero-padded state (XLU-side relayout), then one MXU matmul with the
    # folded location conv x dense weight instead of a K-tap VALU loop.
    shifted = jnp.stack([pad_w[:, k:k + T] for k in range(K)]
                        + [pad_wc[:, k:k + T] for k in range(K)], axis=-1)
    wfold_b = jnp.broadcast_to(wfold_ref[...][None], (Bb, 2 * K, AD))
    loc = jnp.einsum('btk,bka->bta', shifted.astype(bf16), wfold_b,
                     preferred_element_type=f32)                    # (Bb, T, AD)
    pq = jnp.dot(h_att.astype(bf16), wq_ref[...], preferred_element_type=f32)
    e = jnp.tanh(pq[:, None, :] + pmem_ref[...].astype(f32) + loc)
    energies = jnp.sum(e * v_ref[...][None, :, :], axis=-1)         # (Bb, T)

    # masked softmax over T (finite fill value: exp underflows to exactly 0)
    energies = jnp.where(mask_ref[...] > 0.5, -1e30, energies)
    m = jnp.max(energies, axis=-1, keepdims=True)
    ex = jnp.exp(energies - m)
    w_new = ex / jnp.sum(ex, axis=-1, keepdims=True)                # (Bb, T) f32

    # attention context on the MXU: (Bb,1,T) @ (Bb,T,E) -> (Bb,E)
    ctx = jnp.einsum('bqt,bte->bqe', w_new[:, None, :].astype(bf16),
                     memory_ref[...], preferred_element_type=f32)[:, 0, :]

    pad_wc[:, pad:pad + T] = pad_wc[:, pad:pad + T] + w_new
    pad_w[:, pad:pad + T] = w_new
    cat1[:, P:P + E] = ctx
    cat2[:, A:A + E] = ctx
    cat3[:, D:D + E] = ctx

    # ---- decoder LSTMCell: one packed matmul over [h_att | ctx | h_dec] ----
    gd = jnp.dot(cat2[...].astype(bf16), w_dec_ref[...],
                 preferred_element_type=f32) + b_dec_ref[...]
    i_d = jax.nn.sigmoid(gd[:, 0 * D:1 * D])
    f_d = jax.nn.sigmoid(gd[:, 1 * D:2 * D])
    g_d = jnp.tanh(gd[:, 2 * D:3 * D])
    o_d = jax.nn.sigmoid(gd[:, 3 * D:4 * D])
    c_dec_new = f_d * c_dec[...] + i_d * g_d
    h_dec = o_d * jnp.tanh(c_dec_new) * mdec_ref[0]                 # p_decoder_dropout
    c_dec[...] = c_dec_new
    cat2[:, A + E:A + E + D] = h_dec
    cat3[:, 0:D] = h_dec

    # ---- projection | gate: one packed matmul, lane-dense (OUTC % 128 == 0) ----
    out = jnp.dot(cat3[...].astype(bf16), w_out_ref[...],
                  preferred_element_type=f32) + b_out_ref[...]
    melgate_ref[0] = out
    align_ref[0] = w_new


def make_decode_call(hp, B, B_blk, T_pad, T_out, OUTC):
    nm = hp['n_mel_channels'] * hp['n_frames_per_step']
    P, E = hp['prenet_dim'], hp['encoder_embedding_dim']
    A, D = hp['attention_rnn_dim'], hp['decoder_rnn_dim']
    AD = hp['attention_dim']
    K = hp['attention_location_kernel_size']
    pad = (K - 1) // 2
    nb = B // B_blk
    f32 = jnp.float32

    kernel = functools.partial(decode_step_kernel, P, E, A, D, K, pad)

    def stream(last):   # per-step streamed tensor (T_out, B, last)
        return pl.BlockSpec((1, B_blk, last), lambda b, t: (t, b, 0))

    def res3(d1, d2):   # batch-blocked resident tensor (B, d1, d2)
        return pl.BlockSpec((B_blk, d1, d2), lambda b, t: (b, 0, 0))

    def const2(d0, d1):  # fully resident weight (d0, d1)
        return pl.BlockSpec((d0, d1), lambda b, t: (0, 0))

    in_specs = [
        stream(nm),                                   # teacher frame
        stream(P), stream(P),                         # prenet dropout masks
        stream(A), stream(D),                         # hidden dropout masks
        res3(T_pad, E),                               # memory (bf16, resident)
        res3(T_pad, AD),                              # processed memory (bf16)
        pl.BlockSpec((B_blk, T_pad), lambda b, t: (b, 0)),  # padding mask
        const2(nm, P), const2(P, P),                  # prenet weights
        const2(P + E + A, 4 * A), const2(1, 4 * A),   # packed attention LSTM
        const2(A, AD), const2(2 * K, AD), const2(1, AD),
        const2(A + E + D, 4 * D), const2(1, 4 * D),   # packed decoder LSTM
        const2(D + E, OUTC), const2(1, OUTC),         # packed projection|gate
    ]
    out_specs = [
        pl.BlockSpec((1, B_blk, OUTC), lambda b, t: (t, b, 0)),
        pl.BlockSpec((1, B_blk, T_pad), lambda b, t: (t, b, 0)),
    ]
    out_shape = [
        jax.ShapeDtypeStruct((T_out, B, OUTC), f32),
        jax.ShapeDtypeStruct((T_out, B, T_pad), f32),
    ]
    scratch_shapes = [
        pltpu.VMEM((B_blk, A), f32),                  # c_att
        pltpu.VMEM((B_blk, D), f32),                  # c_dec
        pltpu.VMEM((B_blk, P + E + A), f32),          # cat1 (holds ctx/h_att state)
        pltpu.VMEM((B_blk, A + E + D), f32),          # cat2 (holds h_dec state)
        pltpu.VMEM((B_blk, D + E), f32),              # cat3
        pltpu.VMEM((B_blk, T_pad + 2 * pad), f32),    # zero-padded prev attn weights
        pltpu.VMEM((B_blk, T_pad + 2 * pad), f32),    # zero-padded cumulative weights
    ]
    return pl.pallas_call(
        kernel,
        grid=(nb, T_out),
        in_specs=in_specs,
        out_specs=out_specs,
        out_shape=out_shape,
        scratch_shapes=scratch_shapes,
        compiler_params=pltpu.CompilerParams(
            dimension_semantics=("parallel", "arbitrary"),
            vmem_limit_bytes=_vmem_limit_bytes()),
    )


# ---------------------------------------------------------------------------
# Parameter init (mirrors module __init__ shapes; stored packed, f32 masters)
# ---------------------------------------------------------------------------
def init_params(key, hp):
    nm = hp['n_mel_channels'] * hp['n_frames_per_step']
    P, E = hp['prenet_dim'], hp['encoder_embedding_dim']
    A, D = hp['attention_rnn_dim'], hp['decoder_rnn_dim']
    AD = hp['attention_dim']
    NF = hp['attention_location_n_filters']
    K = hp['attention_location_kernel_size']
    ks = list(jax.random.split(key, 16))

    def xavier(k, out_dim, in_dim, gain=1.0):
        a = gain * (6.0 / (in_dim + out_dim)) ** 0.5
        return jax.random.uniform(k, (out_dim, in_dim), jnp.float32, -a, a)

    def lstm_uniform(k, shape, hidden):
        a = 1.0 / (hidden ** 0.5)
        return jax.random.uniform(k, shape, jnp.float32, -a, a)

    def linear_bias(k, out_dim, in_dim):
        a = 1.0 / (in_dim ** 0.5)
        return jax.random.uniform(k, (out_dim,), jnp.float32, -a, a)

    tanh_gain = 5.0 / 3.0

    # Prenet (two Linear, bias=False)
    w_pre1 = xavier(ks[0], P, nm)
    w_pre2 = xavier(ks[1], P, P)

    # attention_rnn = LSTMCell(P + E, A)
    ka = jax.random.split(ks[2], 4)
    W_ih_a = lstm_uniform(ka[0], (4 * A, P + E), A)
    W_hh_a = lstm_uniform(ka[1], (4 * A, A), A)
    b_a = lstm_uniform(ka[2], (4 * A,), A) + lstm_uniform(ka[3], (4 * A,), A)

    # Attention: query / memory / v / location layer
    Wq = xavier(ks[3], AD, A, tanh_gain)
    Wmem = xavier(ks[4], AD, E, tanh_gain)
    Wv = xavier(ks[5], 1, AD)
    a_conv = (6.0 / (2 * K + NF * K)) ** 0.5
    Wconv = jax.random.uniform(ks[6], (NF, 2, K), jnp.float32, -a_conv, a_conv)
    Wloc_dense = xavier(ks[7], AD, NF, tanh_gain)

    # decoder_rnn = LSTMCell(A + E, D)
    kd = jax.random.split(ks[8], 4)
    W_ih_d = lstm_uniform(kd[0], (4 * D, A + E), D)
    W_hh_d = lstm_uniform(kd[1], (4 * D, D), D)
    b_d = lstm_uniform(kd[2], (4 * D,), D) + lstm_uniform(kd[3], (4 * D,), D)

    # linear_projection (D+E -> nm, bias) and gate layer (D+E -> 1, bias)
    Wp = xavier(ks[9], nm, D + E)
    bp = linear_bias(ks[11], nm, D + E)
    Wg = xavier(ks[10], 1, D + E, 1.0)
    bg = linear_bias(ks[12], 1, D + E)

    # Fold location conv (NF,2,K) and location dense (AD,NF) into (2K, AD):
    # row c*K + k -> channel c (0: prev weights, 1: cumulative weights), tap k.
    wfold = jnp.einsum('fck,af->cka', Wconv, Wloc_dense).reshape(2 * K, AD)

    return dict(
        prenet_w1=w_pre1.T, prenet_w2=w_pre2.T,
        wmem=Wmem.T,
        w_att=jnp.concatenate([W_ih_a.T, W_hh_a.T], axis=0),      # (P+E+A, 4A)
        b_att=b_a.reshape(1, 4 * A),
        wq=Wq.T, v=Wv, wfold=wfold,
        w_dec=jnp.concatenate([W_ih_d.T, W_hh_d.T], axis=0),      # (A+E+D, 4D)
        b_dec=b_d.reshape(1, 4 * D),
        w_out=jnp.concatenate([Wp.T, Wg.T], axis=1),              # (D+E, nm+1)
        b_out=jnp.concatenate([bp, bg]).reshape(1, nm + 1),
    )


# ---------------------------------------------------------------------------
# Decoder.forward (teacher forced)
# ---------------------------------------------------------------------------
def decoder_forward(params, hp, memory, decoder_inputs, memory_lengths, key,
                    training=True, batch_block=None):
    f32, bf16 = jnp.float32, jnp.bfloat16
    B, T_in, E = memory.shape
    n_mel = hp['n_mel_channels']
    fps = hp['n_frames_per_step']
    nm = n_mel * fps
    P, A, D = hp['prenet_dim'], hp['attention_rnn_dim'], hp['decoder_rnn_dim']
    AD = hp['attention_dim']

    T_pad = _round_up(T_in, 128)                    # lane-dense encoder time
    OUTC = _round_up(nm + 1, 128)                   # lane-dense projection|gate slab
    B_blk = batch_block or B
    assert B % B_blk == 0

    # parse_decoder_inputs: (B, n_mel, T_mel) -> (T_out, B, nm); prepend go frame,
    # drop the last frame (its prenet output is never consumed by the loop).
    di = jnp.transpose(decoder_inputs, (0, 2, 1)).reshape(B, -1, nm)
    di = jnp.transpose(di, (1, 0, 2))                               # (T_out, B, nm)
    T_out = di.shape[0]
    di_in = jnp.concatenate([jnp.zeros((1, B, nm), f32), di[:T_out - 1]], axis=0)

    # Inverted-dropout keep-masks generated host-side and streamed per step.
    # Prenet dropout is always on (training=True in the reference Prenet.forward).
    kp1, kp2, ka, kd = jax.random.split(key, 4)

    def keep_mask(k, keep, shape):
        if keep >= 1.0:
            return jnp.ones(shape, f32)
        return jax.random.bernoulli(k, keep, shape).astype(f32) / keep

    m_pre1 = keep_mask(kp1, 0.5, (T_out, B, P))
    m_pre2 = keep_mask(kp2, 0.5, (T_out, B, P))
    keep_att = (1.0 - hp['p_attention_dropout']) if training else 1.0
    keep_dec = (1.0 - hp['p_decoder_dropout']) if training else 1.0
    m_att = keep_mask(ka, keep_att, (T_out, B, A))
    m_dec = keep_mask(kd, keep_dec, (T_out, B, D))

    # bf16 residents; lane-pad encoder time and the projection|gate weights
    mem_b = jnp.pad(memory, ((0, 0), (0, T_pad - T_in), (0, 0))).astype(bf16)
    w_out = jnp.pad(params['w_out'], ((0, 0), (0, OUTC - params['w_out'].shape[1])))
    b_out = jnp.pad(params['b_out'], ((0, 0), (0, OUTC - params['b_out'].shape[1])))

    # processed_memory = memory_layer(memory), tiled over the batch
    pmem = pl.pallas_call(
        memory_proj_kernel,
        grid=(B,),
        in_specs=[pl.BlockSpec((1, T_pad, E), lambda b: (b, 0, 0)),
                  pl.BlockSpec((E, AD), lambda b: (0, 0))],
        out_specs=pl.BlockSpec((1, T_pad, AD), lambda b: (b, 0, 0)),
        out_shape=jax.ShapeDtypeStruct((B, T_pad, AD), bf16),
        compiler_params=pltpu.CompilerParams(dimension_semantics=("parallel",)),
    )(mem_b, params['wmem'].astype(bf16))

    # mask = ~get_mask_from_lengths(memory_lengths) -> 1.0 where padded
    ids = jnp.arange(T_pad, dtype=jnp.int32)[None, :]
    mask_f = (ids >= memory_lengths[:, None]).astype(f32)

    decode = make_decode_call(hp, B, B_blk, T_pad, T_out, OUTC)
    melgate, aligns = decode(
        di_in, m_pre1, m_pre2, m_att, m_dec,
        mem_b, pmem, mask_f,
        params['prenet_w1'].astype(bf16), params['prenet_w2'].astype(bf16),
        params['w_att'].astype(bf16), params['b_att'],
        params['wq'].astype(bf16), params['wfold'].astype(bf16), params['v'],
        params['w_dec'].astype(bf16), params['b_dec'],
        w_out.astype(bf16), b_out)

    # parse_decoder_outputs
    alignments = jnp.transpose(aligns[:, :, :T_in], (1, 0, 2))      # (B, T_out, T_in)
    gate_outputs = jnp.transpose(melgate[:, :, nm], (1, 0))         # (B, T_out)
    mel = jnp.transpose(melgate[:, :, :nm], (1, 0, 2))              # (B, T_out, nm)
    mel = mel.reshape(B, T_out * fps, n_mel)
    mel = jnp.transpose(mel, (0, 2, 1))                             # (B, n_mel, T_out*fps)
    return mel, gate_outputs, alignments


# ---------------------------------------------------------------------------
if __name__ == "__main__":
    hp = dict(
        n_mel_channels=8, n_frames_per_step=1,
        encoder_embedding_dim=32, attention_rnn_dim=32, decoder_rnn_dim=32,
        prenet_dim=16, attention_dim=16,
        attention_location_n_filters=8, attention_location_kernel_size=3,
        max_decoder_steps=1000, gate_threshold=0.5,
        p_attention_dropout=0.1, p_decoder_dropout=0.1,
    )
    key = jax.random.PRNGKey(0)
    kp, km, kd, kdrop = jax.random.split(key, 4)
    params = init_params(kp, hp)

    B, T_in, T_out = 2, 8, 4
    memory = jax.random.normal(km, (B, T_in, hp['encoder_embedding_dim']), jnp.float32)
    decoder_inputs = jax.random.normal(
        kd, (B, hp['n_mel_channels'], T_out * hp['n_frames_per_step']), jnp.float32)
    memory_lengths = jnp.array([8, 6], jnp.int32)

    mel, gate, align = decoder_forward(params, hp, memory, decoder_inputs,
                                       memory_lengths, kdrop)
    jax.block_until_ready((mel, gate, align))

    assert mel.shape == (B, hp['n_mel_channels'], T_out * hp['n_frames_per_step'])
    assert gate.shape == (B, T_out)
    assert align.shape == (B, T_out, T_in)
    assert bool(jnp.all(jnp.isfinite(mel)))
    assert bool(jnp.all(jnp.isfinite(align)))
    # attention weights are a softmax over encoder time -> rows sum to 1
    assert bool(jnp.all(jnp.abs(jnp.sum(align, axis=-1) - 1.0) < 1e-3))
    print("KERNEL_OK")
</pallas_src>

<mosaic_0001>
module attributes {stable_mosaic.version = 11 : i64} {
  func.func @memory_proj_kernel(%arg0: i32, %arg1: memref<1x128x32xbf16, #tpu.memory_space<vmem>>, %arg2: memref<32x16xbf16, #tpu.memory_space<vmem>>, %arg3: memref<1x128x16xbf16, #tpu.memory_space<vmem>>) attributes {dimension_semantics = [#tpu.dimension_semantics<parallel>], iteration_bounds = array<i64: 2>, scalar_prefetch = 0 : i64, scratch_operands = 0 : i64, tpu.core_type = #tpu.core_type<tc>, window_params = [{transform_indices = @transform_0, window_bounds = array<i64: 1, 128, 32>}, {pipeline_mode = #tpu.pipeline_mode<synchronous>, transform_indices = @transform_1, window_bounds = array<i64: 32, 16>}, {transform_indices = @transform_2, window_bounds = array<i64: 1, 128, 16>}]} {
    %c0 = arith.constant 0 : index
    %c0_0 = arith.constant 0 : index
    %c0_1 = arith.constant 0 : index
    %0 = vector.load %arg1[%c0, %c0_0, %c0_1] : memref<1x128x32xbf16, #tpu.memory_space<vmem>>, vector<1x128x32xbf16>
    %1 = vector.shape_cast %0 : vector<1x128x32xbf16> to vector<128x32xbf16>
    %c0_2 = arith.constant 0 : index
    %c0_3 = arith.constant 0 : index
    %2 = vector.load %arg2[%c0_2, %c0_3] : memref<32x16xbf16, #tpu.memory_space<vmem>>, vector<32x16xbf16>
    %cst = arith.constant dense<0.000000e+00> : vector<128x16xf32>
    %3 = tpu.matmul %1, %2, %cst {dimension_numbers = #tpu.dot_dimension_numbers<[1], [0], [0], [1], [0, 0, 1, 1], [], []>} : vector<128x32xbf16>, vector<32x16xbf16>, vector<128x16xf32> -> vector<128x16xf32>
    %4 = arith.truncf %3 : vector<128x16xf32> to vector<128x16xbf16>
    %c0_4 = arith.constant 0 : index
    %c0_5 = arith.constant 0 : index
    %c0_6 = arith.constant 0 : index
    %5 = vector.load %arg3[%c0_4, %c0_5, %c0_6] : memref<1x128x16xbf16, #tpu.memory_space<vmem>>, vector<1x128x16xbf16>
    %6 = vector.shape_cast %5 : vector<1x128x16xbf16> to vector<128x16xbf16>
    %7 = vector.shape_cast %4 : vector<128x16xbf16> to vector<1x128x16xbf16>
    tpu.vector_store %arg3[%c0_4, %c0_5, %c0_6], %7 {strides = array<i32>} : memref<1x128x16xbf16, #tpu.memory_space<vmem>>, vector<1x128x16xbf16>,
    return
  }
  func.func @transform_0(%arg0: i32) -> (i32, i32, i32) {
    %c0_i32 = arith.constant 0 : i32
    %c0_i32_0 = arith.constant 0 : i32
    %c0_i32_1 = arith.constant 0 : i32
    return %arg0, %c0_i32, %c0_i32_0 : i32, i32, i32
  }
  func.func @transform_1(%arg0: i32) -> (i32, i32) {
    %c0_i32 = arith.constant 0 : i32
    %c0_i32_0 = arith.constant 0 : i32
    %c0_i32_1 = arith.constant 0 : i32
    return %c0_i32, %c0_i32_0 : i32, i32
  }
  func.func @transform_2(%arg0: i32) -> (i32, i32, i32) {
    %c0_i32 = arith.constant 0 : i32
    %c0_i32_0 = arith.constant 0 : i32
    %c0_i32_1 = arith.constant 0 : i32
    return %arg0, %c0_i32, %c0_i32_0 : i32, i32, i32
  }
}

</mosaic_0001>

<llo_original>
// kernel: tpu_custom_call.1
$region0: #{tpu_custom_call.1}
  #allocation0 [shape = 'u32[]', space=smem, size = 0x4, offset = 0x4, fixed_abs, tag = 'smem constant byte address 0x4 - core index']
  #allocation1 [shape = 'u32[144,128]{1,0:T(1,128)}', space=vmem, size = 0x12000, scoped, tag = 'internal scratch']
  %s0 = inlined_call_operand.vmem [shape: bf16[2,128,32], index: 0, kind: input, shape index: {}]
  %s1 = inlined_call_operand.vmem [shape: bf16[32,16], index: 1, kind: input, shape index: {}]
  %s2 = inlined_call_operand.vmem [shape: bf16[2,128,16], index: 2, kind: output, shape index: {}]
  %s3 = sld [smem:[#allocation0]]
  $region41: #{tpu_custom_call.1} parent=0
    _
  %s5 = ssub.s32 1, %s3
  %s6 = scalar_select 0, %s5, %s3
  loop: start=0, step=1, limit=4
  $region2: #{tpu_custom_call.1} parent=0 // loop_pre_header
    _
  $region3: #{tpu_custom_call.1} parent=0 // loop_header
    %s8 = sphi 0, %s12
    %p9 = scmp.ge.s32.totalorder %s8, 4
    %s18 = sphi 0, %s20
    %s21 = sphi 0, %s18
    %s22 = sphi 0, %s21
    %s38 = sphi 0, %s22
    %s42 = sphi 0, %s42
    %s44 = sphi 0, %s42
    %s45 = sphi 0, %s44
    %s59 = sphi 0, %s45
    %s65 = sphi 0, %s67
    %s68 = sphi 0, %s65
    %s69 = sphi 0, %s68
    %s85 = sphi 0, %s69
  $region4: #{tpu_custom_call.1} parent=0 // loop_header_branch
    %11 = sbr.rel (%p9) target = $region8
  $region5: #{tpu_custom_call.1} parent=0 // loop_body
    %s13 = ssub.s32 %s8, 1
    %s14 = ssub.s32 %s8, 2
    %s15 = sadd.s32 %s8, 1
    %s16 = ssub.s32 %s8, %s15
    %p17 = scmp.eq.s32.totalorder %s16, 0
    %s19 = sadd.s32 %s18, 1
    %s20 = scalar_select %p17, %s18, %s19
    %p23 = pneg %p17
    %p24 = scmp.eq.s32.totalorder %s8, 1
    %p25 = por %p23, %p24
    %p26 = scmp.ne.s32.totalorder %s18, %s21
    %p27 = scmp.eq.s32.totalorder %s8, 0
    %p28 = por %p26, %p27
    %p29 = scmp.ne.s32.totalorder %s18, %s21
    %p30 = scmp.eq.s32.totalorder %s13, 1
    %p31 = por %p29, %p30
    %p32 = scmp.ne.s32.totalorder %s21, %s22
    %p33 = scmp.eq.s32.totalorder %s13, 0
    %p34 = por %p32, %p33
    %p35 = scmp.ne.s32.totalorder %s21, %s22
    %p36 = scmp.eq.s32.totalorder %s14, 1
    %p37 = por %p35, %p36
    %p39 = scmp.ne.s32.totalorder %s22, %s38
    %p40 = scmp.eq.s32.totalorder %s14, 0
    %p41 = por %p39, %p40
    %s43 = sadd.s32 %s42, 1
    %p46 = scmp.eq.s32.totalorder %s8, 1
    %p47 = scmp.ne.s32.totalorder %s42, %s44
    %p48 = scmp.eq.s32.totalorder %s8, 0
    %p49 = por %p47, %p48
    %p50 = scmp.ne.s32.totalorder %s42, %s44
    %p51 = scmp.eq.s32.totalorder %s13, 1
    %p52 = por %p50, %p51
    %p53 = scmp.ne.s32.totalorder %s44, %s45
    %p54 = scmp.eq.s32.totalorder %s13, 0
    %p55 = por %p53, %p54
    %p56 = scmp.ne.s32.totalorder %s44, %s45
    %p57 = scmp.eq.s32.totalorder %s14, 1
    %p58 = por %p56, %p57
    %p60 = scmp.ne.s32.totalorder %s45, %s59
    %p61 = scmp.eq.s32.totalorder %s14, 0
    %p62 = por %p60, %p61
    %s63 = ssub.s32 %s8, %s15
    %p64 = scmp.eq.s32.totalorder %s63, 0
    %s66 = sadd.s32 %s65, 1
    %s67 = scalar_select %p64, %s65, %s66
    %p70 = pneg %p64
    %p71 = scmp.eq.s32.totalorder %s8, 1
    %p72 = por %p70, %p71
    %p73 = scmp.ne.s32.totalorder %s65, %s68
    %p74 = scmp.eq.s32.totalorder %s8, 0
    %p75 = por %p73, %p74
    %p76 = scmp.ne.s32.totalorder %s65, %s68
    %p77 = scmp.eq.s32.totalorder %s13, 1
    %p78 = por %p76, %p77
    %p79 = scmp.ne.s32.totalorder %s68, %s69
    %p80 = scmp.eq.s32.totalorder %s13, 0
    %p81 = por %p79, %p80
    %p82 = scmp.ne.s32.totalorder %s68, %s69
    %p83 = scmp.eq.s32.totalorder %s14, 1
    %p84 = por %p82, %p83
    %p86 = scmp.ne.s32.totalorder %s69, %s85
    %p87 = scmp.eq.s32.totalorder %s14, 0
    %p88 = por %p86, %p87
    %p89 = scmp.le.s32.totalorder 1, %s8
    %p90 = scmp.lt.s32.totalorder %s8, 3
    %p91 = pnand %p89, %p90
    %p92 = pneg %p91
    // Predicated region
    $region9: #{tpu_custom_call.1} parent=5 // pred_check
      _
    $region10: #{tpu_custom_call.1} parent=5 // pred_check_branch
      %94 = sbr.rel (%p91) target = $region12
    $region11: #{tpu_custom_call.1} parent=5 // pred_region
      %s95 = ssub.s32 %s8, 1
      // Predicated region
      $region13: #{tpu_custom_call.1} parent=11 // pred_check
        %p96 = pneg %p55
      $region14: #{tpu_custom_call.1} parent=11 // pred_check_branch
        %98 = sbr.rel (%p96) target = $region16
      $region15: #{tpu_custom_call.1} parent=11 // pred_region
        _
      $region16: #{tpu_custom_call.1} parent=11 // pred_fallthru
        _
    $region12: #{tpu_custom_call.1} parent=5 // pred_fallthru
      _
    %p99 = scmp.lt.s32.totalorder %s8, 2
    // Predicated region
    $region17: #{tpu_custom_call.1} parent=5 // pred_check
      %p100 = pneg %p99
    $region18: #{tpu_custom_call.1} parent=5 // pred_check_branch
      %102 = sbr.rel (%p100) target = $region20
    $region19: #{tpu_custom_call.1} parent=5 // pred_region
      // Predicated region
      $region21: #{tpu_custom_call.1} parent=19 // pred_check
        %p103 = pneg %p28
      $region22: #{tpu_custom_call.1} parent=19 // pred_check_branch
        %105 = sbr.rel (%p103) target = $region24
      $region23: #{tpu_custom_call.1} parent=19 // pred_region
        %p106 = scmp.lt.s32.totalorder %s8, 1
        %s107 = scalar_select %p106, %s8, 1
        %s108 = smul.addr %s107, 16
        %s109 = smul.addr %s108, 4
        %s110 = scalar_lea.vmem %s0, %s109
      $region24: #{tpu_custom_call.1} parent=19 // pred_fallthru
        _
    $region20: #{tpu_custom_call.1} parent=5 // pred_fallthru
      _
    %p111 = scmp.le.s32.totalorder 1, %s8
    %p112 = scmp.lt.s32.totalorder %s8, 3
    %p113 = pnand %p111, %p112
    %p114 = pneg %p113
    // Predicated region
    $region25: #{tpu_custom_call.1} parent=5 // pred_check
      _
    $region26: #{tpu_custom_call.1} parent=5 // pred_check_branch
      %116 = sbr.rel (%p113) target = $region28
    $region27: #{tpu_custom_call.1} parent=5 // pred_region
      %s117 = ssub.s32 %s8, 1
      %p118 = scmp.lt.s32.totalorder %s13, 1
      %s119 = scalar_select %p118, %s13, 1
      %s120 = smul.addr %s119, 16
      %s121 = smul.addr %s120, 4
      %s122 = scalar_lea.vmem %s0, %s121
      %p123 = pneg %p34
      %p124 = pneg %p31
      %p125 = pneg %p55
      %p126 = pneg %p52
      %p127 = pneg %p81
      %p128 = pneg %p78
      %p129 = scmp.lt.s32.totalorder %s13, 1
      %s130 = scalar_select %p129, %s13, 1
      %s131 = smul.addr %s130, 16
      %s132 = smul.addr %s131, 4
      %s133 = scalar_lea.vmem %s2, %s132
      %p134 = scmp.lt.s32.totalorder %s13, 1
      %s135 = scalar_select %p134, %s13, 1
      %s136 = smul.addr %s135, 16
      %s137 = smul.addr %s136, 4
      %s138 = scalar_lea.vmem %s0, %s137
      %p139 = scmp.lt.s32.totalorder %s13, 1
      %s140 = scalar_select %p139, %s13, 1
      %s141 = smul.addr %s140, 16
      %s142 = smul.addr %s141, 4
      %s143 = scalar_lea.vmem %s2, %s142
      %v145 = vld [vmem:[%s138] sm:$0xf]
      %v146 = vld [vmem:[%s138 + $0x4] sm:$0xf]
      %v147 = vld [vmem:[%s138 + $0x8] sm:$0xf]
      %v148 = vld [vmem:[%s138 + $0xc] sm:$0xf]
      %v149 = vld [vmem:[%s138 + $0x10] sm:$0xf]
      %v150 = vld [vmem:[%s138 + $0x14] sm:$0xf]
      %v151 = vld [vmem:[%s138 + $0x18] sm:$0xf]
      %v152 = vld [vmem:[%s138 + $0x1c] sm:$0xf]
      %v153 = vld [vmem:[%s138 + $0x20] sm:$0xf]
      %v154 = vld [vmem:[%s138 + $0x24] sm:$0xf]
      %v155 = vld [vmem:[%s138 + $0x28] sm:$0xf]
      %v156 = vld [vmem:[%s138 + $0x2c] sm:$0xf]
      %v157 = vld [vmem:[%s138 + $0x30] sm:$0xf]
      %v158 = vld [vmem:[%s138 + $0x34] sm:$0xf]
      %v159 = vld [vmem:[%s138 + $0x38] sm:$0xf]
      %v160 = vld [vmem:[%s138 + $0x3c] sm:$0xf]
      %v161 = vld [vmem:[%s1] sm:$0xf]
      %v162 = vld [vmem:[%s1 + $0x4] sm:$0xf]
      %v163 = vld [vmem:[%s1 + $0x8] sm:$0xf]
      %v164 = vld [vmem:[%s1 + $0xc] sm:$0xf]
      %v181 = vunpack.c.l.b16 %v145
      %v182 = vunpack.c.l.b16 %v146
      %v183 = vunpack.c.l.b16 %v147
      %v184 = vunpack.c.l.b16 %v148
      %v185 = vunpack.c.l.b16 %v149
      %v186 = vunpack.c.l.b16 %v150
      %v187 = vunpack.c.l.b16 %v151
      %v188 = vunpack.c.l.b16 %v152
      %v189 = vunpack.c.l.b16 %v153
      %v190 = vunpack.c.l.b16 %v154
      %v191 = vunpack.c.l.b16 %v155
      %v192 = vunpack.c.l.b16 %v156
      %v193 = vunpack.c.l.b16 %v157
      %v194 = vunpack.c.l.b16 %v158
      %v195 = vunpack.c.l.b16 %v159
      %v196 = vunpack.c.l.b16 %v160
      %v197 = vpack.c.b16 %v182, %v181
      %v198 = vpack.c.b16 %v184, %v183
      %v199 = vpack.c.b16 %v186, %v185
      %v200 = vpack.c.b16 %v188, %v187
      %v201 = vpack.c.b16 %v190, %v189
      %v202 = vpack.c.b16 %v192, %v191
      %v203 = vpack.c.b16 %v194, %v193
      %v204 = vpack.c.b16 %v196, %v195
      %v209 = vunpack.c.l.b16 %v161
      %v210 = vunpack.c.l.b16 %v162
      %v211 = vunpack.c.l.b16 %v163
      %v212 = vunpack.c.l.b16 %v164
      %v213 = vpack.c.b16 %v210, %v209
      %v214 = vpack.c.b16 %v212, %v211
      %vm217 = vcmask 261120
      %v219 = vsel %vm217, %v197, 0
      %v222 = vsel %vm217, %v198, 0
      %v225 = vsel %vm217, %v199, 0
      %v228 = vsel %vm217, %v200, 0
      %v231 = vsel %vm217, %v201, 0
      %v234 = vsel %vm217, %v202, 0
      %v237 = vsel %vm217, %v203, 0
      %v240 = vsel %vm217, %v204, 0
      %242 = vmatprep.subr.bf16.mxu0 0
      %243 = vmatpush1.bf16.msra.mxu0 0
      %244 = vmatprep.subr.bf16.mxu0 0
      %245 = vmatpush1.bf16.msra.mxu0 0
      %246 = vmatprep.subr.bf16.mxu0 0
      %247 = vmatpush1.bf16.msra.mxu0 0
      %248 = vmatprep.subr.bf16.mxu0 0
      %249 = vmatpush1.bf16.msra.mxu0 0
      %250 = vmatprep.subr.bf16.mxu0 0
      %251 = vmatpush1.bf16.msra.mxu0 0
      %252 = vmatprep.subr.bf16.mxu0 0
      %253 = vmatpush1.bf16.msra.mxu0 0
      %254 = vmatprep.subr.bf16.mxu0 0
      %255 = vmatpush1.bf16.msra.mxu0 %v214
      %256 = vmatprep.subr.bf16.mxu0 0
      %257 = vmatpush1.bf16.msra.mxu0 %v213
      %258 = vmatprep.subr.bf16.mxu0 0
      %259 = vmatpush2.bf16.msra.mxu0 0
      %260 = vmatprep.subr.bf16.mxu0 0
      %261 = vmatpush2.bf16.msra.mxu0 0
      %262 = vmatprep.subr.bf16.mxu0 0
      %263 = vmatpush2.bf16.msra.mxu0 0
      %264 = vmatprep.subr.bf16.mxu0 0
      %265 = vmatpush2.bf16.msra.mxu0 0
      %266 = vmatprep.subr.bf16.mxu0 0
      %267 = vmatpush2.bf16.msra.mxu0 0
      %268 = vmatprep.subr.bf16.mxu0 0
      %269 = vmatpush2.bf16.msra.mxu0 0
      %270 = vmatprep.subr.bf16.mxu0 0
      %271 = vmatpush2.bf16.msra.mxu0 0
      %272 = vmatprep.subr.bf16.mxu0 0
      %273 = vmatpush2.bf16.msra.mxu0 0
      %274 = vmatprep.mubr.bf16.mxu0 0
      %275 = vmatmul.mubr.bf16.gmra.mxu0 %v219
      %v276 = vpop.f32.mrf.mxu0
      %v277 = vadd.f32 0.0, %v276
      %v278 = vpop.f32.mrf.mxu0
      %v279 = vpop.f32.mrf.mxu0
      %v280 = vadd.f32 0.0, %v279
      %v281 = vpop.f32.mrf.mxu0
      %282 = vmatprep.mubr.bf16.mxu0 0
      %283 = vmatmul.mubr.bf16.gmra.mxu0 %v222
      %v284 = vpop.f32.mrf.mxu0
      %v285 = vadd.f32 0.0, %v284
      %v286 = vpop.f32.mrf.mxu0
      %v287 = vpop.f32.mrf.mxu0
      %v288 = vadd.f32 0.0, %v287
      %v289 = vpop.f32.mrf.mxu0
      %290 = vmatprep.mubr.bf16.mxu0 0
      %291 = vmatmul.mubr.bf16.gmra.mxu0 %v225
      %v292 = vpop.f32.mrf.mxu0
      %v293 = vadd.f32 0.0, %v292
      %v294 = vpop.f32.mrf.mxu0
      %v295 = vpop.f32.mrf.mxu0
      %v296 = vadd.f32 0.0, %v295
      %v297 = vpop.f32.mrf.mxu0
      %298 = vmatprep.mubr.bf16.mxu0 0
      %299 = vmatmul.mubr.bf16.gmra.mxu0 %v228
      %v300 = vpop.f32.mrf.mxu0
      %v301 = vadd.f32 0.0, %v300
      %v302 = vpop.f32.mrf.mxu0
      %v303 = vpop.f32.mrf.mxu0
      %v304 = vadd.f32 0.0, %v303
      %v305 = vpop.f32.mrf.mxu0
      %306 = vmatprep.mubr.bf16.mxu0 0
      %307 = vmatmul.mubr.bf16.gmra.mxu0 %v231
      %v308 = vpop.f32.mrf.mxu0
      %v309 = vadd.f32 0.0, %v308
      %v310 = vpop.f32.mrf.mxu0
      %v311 = vpop.f32.mrf.mxu0
      %v312 = vadd.f32 0.0, %v311
      %v313 = vpop.f32.mrf.mxu0
      %314 = vmatprep.mubr.bf16.mxu0 0
      %315 = vmatmul.mubr.bf16.gmra.mxu0 %v234
      %v316 = vpop.f32.mrf.mxu0
      %v317 = vadd.f32 0.0, %v316
      %v318 = vpop.f32.mrf.mxu0
      %v319 = vpop.f32.mrf.mxu0
      %v320 = vadd.f32 0.0, %v319
      %v321 = vpop.f32.mrf.mxu0
      %322 = vmatprep.mubr.bf16.mxu0 0
      %323 = vmatmul.mubr.bf16.gmra.mxu0 %v237
      %v324 = vpop.f32.mrf.mxu0
      %v325 = vadd.f32 0.0, %v324
      %v326 = vpop.f32.mrf.mxu0
      %v327 = vpop.f32.mrf.mxu0
      %v328 = vadd.f32 0.0, %v327
      %v329 = vpop.f32.mrf.mxu0
      %330 = vmatprep.mubr.bf16.mxu0 0
      %331 = vmatmul.mubr.bf16.gmra.mxu0 %v240
      %v332 = vpop.f32.mrf.mxu0
      %v333 = vadd.f32 0.0, %v332
      %v334 = vpop.f32.mrf.mxu0
      %v335 = vpop.f32.mrf.mxu0
      %v336 = vadd.f32 0.0, %v335
      %v337 = vpop.f32.mrf.mxu0
      %338 = vdwg.mxu0
      %v339 = vpack.c.bf16 %v280, %v277
      %v340 = vpack.c.bf16 %v288, %v285
      %v341 = vpack.c.bf16 %v296, %v293
      %v342 = vpack.c.bf16 %v304, %v301
      %v343 = vpack.c.bf16 %v312, %v309
      %v344 = vpack.c.bf16 %v320, %v317
      %v345 = vpack.c.bf16 %v328, %v325
      %v346 = vpack.c.bf16 %v336, %v333
      %v355 = vunpack.c.l.b16 %v339
      %v356 = vunpack.c.h.b16 %v339
      %v357 = vunpack.c.l.b16 %v340
      %v358 = vunpack.c.h.b16 %v340
      %v359 = vunpack.c.l.b16 %v341
      %v360 = vunpack.c.h.b16 %v341
      %v361 = vunpack.c.l.b16 %v342
      %v362 = vunpack.c.h.b16 %v342
      %v363 = vunpack.c.l.b16 %v343
      %v364 = vunpack.c.h.b16 %v343
      %v365 = vunpack.c.l.b16 %v344
      %v366 = vunpack.c.h.b16 %v344
      %v367 = vunpack.c.l.b16 %v345
      %v368 = vunpack.c.h.b16 %v345
      %v369 = vunpack.c.l.b16 %v346
      %v370 = vunpack.c.h.b16 %v346
      %v371 = vpack.c.b16 %v355, %v355
      %v372 = vpack.c.b16 %v356, %v356
      %v373 = vpack.c.b16 %v357, %v357
      %v374 = vpack.c.b16 %v358, %v358
      %v375 = vpack.c.b16 %v359, %v359
      %v376 = vpack.c.b16 %v360, %v360
      %v377 = vpack.c.b16 %v361, %v361
      %v378 = vpack.c.b16 %v362, %v362
      %v379 = vpack.c.b16 %v363, %v363
      %v380 = vpack.c.b16 %v364, %v364
      %v381 = vpack.c.b16 %v365, %v365
      %v382 = vpack.c.b16 %v366, %v366
      %v383 = vpack.c.b16 %v367, %v367
      %v384 = vpack.c.b16 %v368, %v368
      %v385 = vpack.c.b16 %v369, %v369
      %v386 = vpack.c.b16 %v370, %v370
      %vm403 = vcmask 125952
      %404 = vst.msk [vmem:[%s143] sm:$0xf] %vm403, %v371
      %405 = vst.msk [vmem:[%s143 + $0x4] sm:$0xf] %vm403, %v372
      %406 = vst.msk [vmem:[%s143 + $0x8] sm:$0xf] %vm403, %v373
      %407 = vst.msk [vmem:[%s143 + $0xc] sm:$0xf] %vm403, %v374
      %408 = vst.msk [vmem:[%s143 + $0x10] sm:$0xf] %vm403, %v375
      %409 = vst.msk [vmem:[%s143 + $0x14] sm:$0xf] %vm403, %v376
      %410 = vst.msk [vmem:[%s143 + $0x18] sm:$0xf] %vm403, %v377
      %411 = vst.msk [vmem:[%s143 + $0x1c] sm:$0xf] %vm403, %v378
      %412 = vst.msk [vmem:[%s143 + $0x20] sm:$0xf] %vm403, %v379
      %413 = vst.msk [vmem:[%s143 + $0x24] sm:$0xf] %vm403, %v380
      %414 = vst.msk [vmem:[%s143 + $0x28] sm:$0xf] %vm403, %v381
      %415 = vst.msk [vmem:[%s143 + $0x2c] sm:$0xf] %vm403, %v382
      %416 = vst.msk [vmem:[%s143 + $0x30] sm:$0xf] %vm403, %v383
      %417 = vst.msk [vmem:[%s143 + $0x34] sm:$0xf] %vm403, %v384
      %418 = vst.msk [vmem:[%s143 + $0x38] sm:$0xf] %vm403, %v385
      %419 = vst.msk [vmem:[%s143 + $0x3c] sm:$0xf] %vm403, %v386
      %p420 = scmp.lt.s32.totalorder %s13, 1
      %s421 = scalar_select %p420, %s13, 1
      %s422 = smul.addr %s421, 16
      %s423 = smul.addr %s422, 4
      %s424 = scalar_lea.vmem %s2, %s423
      // Predicated region
      $region29: #{tpu_custom_call.1} parent=27 // pred_check
        %p425 = pneg %p78
      $region30: #{tpu_custom_call.1} parent=27 // pred_check_branch
        %427 = sbr.rel (%p425) target = $region32
      $region31: #{tpu_custom_call.1} parent=27 // pred_region
        _
      $region32: #{tpu_custom_call.1} parent=27 // pred_fallthru
        _
    $region28: #{tpu_custom_call.1} parent=5 // pred_fallthru
      _
    %p428 = scmp.le.s32.totalorder 2, %s8
    // Predicated region
    $region33: #{tpu_custom_call.1} parent=5 // pred_check
      %p429 = pneg %p428
    $region34: #{tpu_custom_call.1} parent=5 // pred_check_branch
      %431 = sbr.rel (%p429) target = $region36
    $region35: #{tpu_custom_call.1} parent=5 // pred_region
      %s432 = ssub.s32 %s8, 2
      // Predicated region
      $region37: #{tpu_custom_call.1} parent=35 // pred_check
        %p433 = pneg %p84
      $region38: #{tpu_custom_call.1} parent=35 // pred_check_branch
        %435 = sbr.rel (%p433) target = $region40
      $region39: #{tpu_custom_call.1} parent=35 // pred_region
        %p436 = scmp.lt.s32.totalorder %s14, 1
        %s437 = scalar_select %p436, %s14, 1
        %s438 = smul.addr %s437, 16
        %s439 = smul.addr %s438, 4
        %s440 = scalar_lea.vmem %s2, %s439
      $region40: #{tpu_custom_call.1} parent=35 // pred_fallthru
        _
    $region36: #{tpu_custom_call.1} parent=5 // pred_fallthru
      _
  $region6: #{tpu_custom_call.1} parent=0 // loop_footer
    %s12 = sadd.s32 1, %s8
  $region7: #{tpu_custom_call.1} parent=0 // loop_footer_branch
    %7 = sbr.rel target = $region3
  $region8: #{tpu_custom_call.1} parent=0 // loop_exit
    _

</llo_original>
